<compile_context>
chip_gen: v7x
topology: tpu7x:2x2x1
jax: 0.10.0
libtpu: 0.0.40
codegen_flags: <defaults>
</compile_context>

<pallas_src>
import functools

import jax
import jax.numpy as jnp
from jax.experimental import pallas as pl
from jax.experimental.pallas import tpu as pltpu


def _gnll_kernel(loc_ref, scale_ref, target_ref, out_ref, *, eps):
    """Accumulate sum(log(var) + (t - loc)^2 / var) into this split's block."""
    i = pl.program_id(1)

    @pl.when(i == 0)
    def _():
        out_ref[...] = jnp.zeros_like(out_ref)

    loc = loc_ref[...].astype(jnp.float32)
    scale = jnp.maximum(scale_ref[...].astype(jnp.float32), jnp.float32(eps))
    t = target_ref[...].astype(jnp.float32)

    var = scale * scale
    diff = t - loc
    # 0.5 and the mean divisor are hoisted to the wrapper; the divide is an
    # explicit reciprocal (EUP slot).
    contrib = jnp.log(var) + (diff * diff) * pl.reciprocal(var)

    # Lane-parallel accumulation: sublane-only reduce per step; the single
    # cross-lane reduction happens once, in the wrapper.
    out_ref[...] += jnp.sum(contrib, axis=0, keepdims=True)[None]


def _round_up(a, b):
    return -(-a // b) * b


def _pick_tile_rows(d, pred_itemsize, targ_itemsize, rows, num_splits,
                    max_tile_rows=1024):
    # Double-buffered input bytes per row: loc + scale + target tiles.
    per_row = 2 * d * (2 * pred_itemsize + targ_itemsize)
    # 12 MiB of input tiles stays inside the default scoped-VMEM limit on all
    # generations (16 MiB v5e, 32 MiB v6e/v7x); additionally cap at 1/8 of
    # physical VMEM (v7x only has 64 MiB).
    budget = 12 * 1024 * 1024
    try:
        budget = min(budget, pltpu.get_tpu_info().vmem_capacity_bytes // 8)
    except Exception:  # hardware info unavailable (e.g. interpret mode)
        pass
    tr = min(max_tile_rows, max(8, budget // per_row))
    # Don't make the tile larger than one split's worth of rows.
    rows_per_split = -(-rows // num_splits)
    tr = min(tr, _round_up(rows_per_split, 8))
    return max(8, (tr // 8) * 8)


def gaussian_nll_loss(pred, target, *, eps=1e-6, reduction="mean",
                      tile_rows=None, num_splits=2):
    """Pallas implementation of the GaussianNLLLoss module forward pass."""
    if reduction not in ("mean", "sum"):
        # TODO(synk): reduction='none' needs an elementwise-output kernel.
        raise ValueError(f"{reduction} is not a valid value for reduction")
    assert pred.shape[-1] == 2 * target.shape[-1]

    d = target.shape[-1]
    pred2d = pred.reshape(-1, 2 * d)
    targ2d = target.reshape(-1, d)
    rows = pred2d.shape[0]
    total_count = rows * d  # true element count (mean divisor)

    if tile_rows is None:
        tile_rows = _pick_tile_rows(d, pred2d.dtype.itemsize,
                                    targ2d.dtype.itemsize, rows, num_splits)
    assert tile_rows % 8 == 0

    padded_rows = _round_up(rows, num_splits * tile_rows)
    tiles_per_split = padded_rows // (num_splits * tile_rows)
    pad = padded_rows - rows

    split_cols = (d % 128 == 0)
    if split_cols:
        # loc / scale come straight from column blocks 0 / 1 of pred.
        if pad:
            neutral = jnp.concatenate(
                [jnp.zeros((pad, d), pred2d.dtype),
                 jnp.ones((pad, d), pred2d.dtype)], axis=-1)
            pred2d = jnp.concatenate([pred2d, neutral], axis=0)
        loc_arr, scale_arr = pred2d, pred2d
        scale_col = 1
    else:
        # Fallback for lane-unfriendly D: slice in the wrapper so every
        # block's last dim equals the full array dim.
        loc_arr = pred2d[:, :d]
        scale_arr = pred2d[:, d:]
        if pad:
            loc_arr = jnp.concatenate(
                [loc_arr, jnp.zeros((pad, d), loc_arr.dtype)], axis=0)
            scale_arr = jnp.concatenate(
                [scale_arr, jnp.ones((pad, d), scale_arr.dtype)], axis=0)
        scale_col = 0
    if pad:
        targ2d = jnp.concatenate(
            [targ2d, jnp.zeros((pad, d), targ2d.dtype)], axis=0)

    def row_block(s, i):
        return s * tiles_per_split + i

    partial = pl.pallas_call(
        functools.partial(_gnll_kernel, eps=eps),
        out_shape=jax.ShapeDtypeStruct((num_splits, 1, d), jnp.float32),
        grid_spec=pltpu.PrefetchScalarGridSpec(
            num_scalar_prefetch=0,
            grid=(num_splits, tiles_per_split),
            in_specs=[
                pl.BlockSpec((tile_rows, d),
                             lambda s, i: (row_block(s, i), 0)),
                pl.BlockSpec((tile_rows, d),
                             lambda s, i: (row_block(s, i), scale_col)),
                pl.BlockSpec((tile_rows, d),
                             lambda s, i: (row_block(s, i), 0)),
            ],
            out_specs=pl.BlockSpec((1, 1, d), lambda s, i: (s, 0, 0)),
        ),
        compiler_params=pltpu.CompilerParams(
            dimension_semantics=("parallel", "arbitrary"),
        ),
    )(loc_arr, scale_arr, targ2d)

    total = 0.5 * jnp.sum(partial)
    if reduction == "mean":
        total = total / jnp.float32(total_count)
    return total


def _reference(pred, target, eps=1e-6):
    d = target.shape[-1]
    loc = pred[..., :d]
    scale = jnp.maximum(pred[..., d:], eps)
    nll = 0.5 * (jnp.log(scale ** 2) + jnp.abs(target - loc) ** 2 / scale ** 2)
    return jnp.mean(nll)


if __name__ == "__main__":
    key = jax.random.PRNGKey(0)
    k1, k2, k3, k4 = jax.random.split(key, 4)

    # Case 1: batch=2, seq=8, hidden D=128 (pred last dim 256).
    B, S, D = 2, 8, 128
    pred = jax.random.normal(k1, (B, S, 2 * D), dtype=jnp.float32)
    # make the scale half mostly positive, with small values to exercise clamp
    pred = pred.at[..., D:].set(jnp.abs(pred[..., D:]) * 0.5)
    target = jax.random.normal(k2, (B, S, D), dtype=jnp.float32)
    out = jax.block_until_ready(gaussian_nll_loss(pred, target, eps=1e-6))
    ref = _reference(pred, target, eps=1e-6)
    assert jnp.allclose(out, ref, rtol=1e-5, atol=1e-5), (out, ref)

    # Case 2: row count not divisible by the tile (exercises neutral padding).
    B2, S2, D2 = 2, 5, 128
    pred2 = jax.random.normal(k3, (B2, S2, 2 * D2), dtype=jnp.float32)
    target2 = jax.random.normal(k4, (B2, S2, D2), dtype=jnp.float32)
    out2 = jax.block_until_ready(gaussian_nll_loss(pred2, target2, eps=1e-6))
    ref2 = _reference(pred2, target2, eps=1e-6)
    assert jnp.allclose(out2, ref2, rtol=1e-5, atol=1e-5), (out2, ref2)

    # Case 3: D not a multiple of 128 (wrapper-side loc/scale split fallback).
    B3, S3, D3 = 2, 8, 64
    pred3 = jax.random.normal(k1, (B3, S3, 2 * D3), dtype=jnp.float32)
    target3 = jax.random.normal(k2, (B3, S3, D3), dtype=jnp.float32)
    out3 = jax.block_until_ready(gaussian_nll_loss(pred3, target3, eps=1e-6))
    ref3 = _reference(pred3, target3, eps=1e-6)
    assert jnp.allclose(out3, ref3, rtol=1e-5, atol=1e-5), (out3, ref3)

    print("KERNEL_OK")
</pallas_src>

<mosaic_0001>
module attributes {stable_mosaic.version = 11 : i64} {
  func.func @_gnll_kernel(%arg0: i32, %arg1: i32, %arg2: memref<8x128xf32, #tpu.memory_space<vmem>>, %arg3: memref<8x128xf32, #tpu.memory_space<vmem>>, %arg4: memref<8x128xf32, #tpu.memory_space<vmem>>, %arg5: memref<1x1x128xf32, #tpu.memory_space<vmem>>) attributes {dimension_semantics = [#tpu.dimension_semantics<parallel>, #tpu.dimension_semantics<arbitrary>], iteration_bounds = array<i64: 2, 1>, scalar_prefetch = 0 : i64, scratch_operands = 0 : i64, tpu.core_type = #tpu.core_type<tc>, window_params = [{transform_indices = @transform_0, window_bounds = array<i64: 8, 128>}, {transform_indices = @transform_1, window_bounds = array<i64: 8, 128>}, {transform_indices = @transform_2, window_bounds = array<i64: 8, 128>}, {transform_indices = @transform_3, window_bounds = array<i64: 1, 1, 128>}]} {
    %c0_i32 = arith.constant 0 : i32
    %0 = arith.cmpi eq, %arg1, %c0_i32 : i32
    %1 = arith.extui %0 : i1 to i32
    %c0_i32_0 = arith.constant 0 : i32
    %2 = arith.cmpi ne, %1, %c0_i32_0 : i32
    scf.if %2 {
      %cst_13 = arith.constant 0.000000e+00 : f32
      %21 = vector.broadcast %cst_13 : f32 to vector<1x1x128xf32>
      %c0_14 = arith.constant 0 : index
      %c0_15 = arith.constant 0 : index
      %c0_16 = arith.constant 0 : index
      %22 = vector.load %arg5[%c0_14, %c0_15, %c0_16] : memref<1x1x128xf32, #tpu.memory_space<vmem>>, vector<1x1x128xf32>
      tpu.vector_store %arg5[%c0_14, %c0_15, %c0_16], %21 {strides = array<i32>} : memref<1x1x128xf32, #tpu.memory_space<vmem>>, vector<1x1x128xf32>,
    } else {
    }
    %c0 = arith.constant 0 : index
    %c0_1 = arith.constant 0 : index
    %3 = vector.load %arg2[%c0, %c0_1] : memref<8x128xf32, #tpu.memory_space<vmem>>, vector<8x128xf32>
    %c0_2 = arith.constant 0 : index
    %c0_3 = arith.constant 0 : index
    %4 = vector.load %arg3[%c0_2, %c0_3] : memref<8x128xf32, #tpu.memory_space<vmem>>, vector<8x128xf32>
    %cst = arith.constant 9.99999997E-7 : f32
    %5 = vector.broadcast %cst : f32 to vector<8x128xf32>
    %6 = arith.maximumf %4, %5 : vector<8x128xf32>
    %c0_4 = arith.constant 0 : index
    %c0_5 = arith.constant 0 : index
    %7 = vector.load %arg4[%c0_4, %c0_5] : memref<8x128xf32, #tpu.memory_space<vmem>>, vector<8x128xf32>
    %8 = arith.mulf %6, %6 : vector<8x128xf32>
    %9 = arith.subf %7, %3 : vector<8x128xf32>
    %10 = math.log %8 : vector<8x128xf32>
    %11 = arith.mulf %9, %9 : vector<8x128xf32>
    %12 = tpu.reciprocal %8 : vector<8x128xf32> -> vector<8x128xf32>
    %13 = arith.mulf %11, %12 : vector<8x128xf32>
    %14 = arith.addf %10, %13 : vector<8x128xf32>
    %c0_6 = arith.constant 0 : index
    %c0_7 = arith.constant 0 : index
    %c0_8 = arith.constant 0 : index
    %15 = vector.load %arg5[%c0_6, %c0_7, %c0_8] : memref<1x1x128xf32, #tpu.memory_space<vmem>>, vector<1x1x128xf32>
    %cst_9 = arith.constant dense<0.000000e+00> : vector<128xf32>
    %16 = vector.multi_reduction <add>, %14, %cst_9 [0] : vector<8x128xf32> to vector<128xf32>
    %17 = vector.shape_cast %16 : vector<128xf32> to vector<1x128xf32>
    %18 = vector.shape_cast %17 : vector<1x128xf32> to vector<1x1x128xf32>
    %19 = arith.addf %15, %18 : vector<1x1x128xf32>
    %c0_10 = arith.constant 0 : index
    %c0_11 = arith.constant 0 : index
    %c0_12 = arith.constant 0 : index
    %20 = vector.load %arg5[%c0_10, %c0_11, %c0_12] : memref<1x1x128xf32, #tpu.memory_space<vmem>>, vector<1x1x128xf32>
    tpu.vector_store %arg5[%c0_10, %c0_11, %c0_12], %19 {strides = array<i32>} : memref<1x1x128xf32, #tpu.memory_space<vmem>>, vector<1x1x128xf32>,
    return
  }
  func.func @transform_0(%arg0: i32, %arg1: i32) -> (i32, i32) {
    %c1_i32 = arith.constant 1 : i32
    %0 = arith.muli %arg0, %c1_i32 : i32
    %1 = arith.addi %0, %arg1 : i32
    %c0_i32 = arith.constant 0 : i32
    %c0_i32_0 = arith.constant 0 : i32
    return %1, %c0_i32 : i32, i32
  }
  func.func @transform_1(%arg0: i32, %arg1: i32) -> (i32, i32) {
    %c1_i32 = arith.constant 1 : i32
    %0 = arith.muli %arg0, %c1_i32 : i32
    %1 = arith.addi %0, %arg1 : i32
    %c1_i32_0 = arith.constant 1 : i32
    %c0_i32 = arith.constant 0 : i32
    return %1, %c1_i32_0 : i32, i32
  }
  func.func @transform_2(%arg0: i32, %arg1: i32) -> (i32, i32) {
    %c1_i32 = arith.constant 1 : i32
    %0 = arith.muli %arg0, %c1_i32 : i32
    %1 = arith.addi %0, %arg1 : i32
    %c0_i32 = arith.constant 0 : i32
    %c0_i32_0 = arith.constant 0 : i32
    return %1, %c0_i32 : i32, i32
  }
  func.func @transform_3(%arg0: i32, %arg1: i32) -> (i32, i32, i32) {
    %c0_i32 = arith.constant 0 : i32
    %c0_i32_0 = arith.constant 0 : i32
    %c0_i32_1 = arith.constant 0 : i32
    return %arg0, %c0_i32, %c0_i32_0 : i32, i32, i32
  }
}

</mosaic_0001>

<llo_original>
// kernel: tpu_custom_call.1
$region0: #{tpu_custom_call.1}
  #allocation0 [shape = 'u32[]', space=smem, size = 0x4, offset = 0x4, fixed_abs, tag = 'smem constant byte address 0x4 - core index']
  #allocation1 [shape = 'u32[144,128]{1,0:T(1,128)}', space=vmem, size = 0x12000, scoped, tag = 'internal scratch']
  %s0 = inlined_call_operand.hbm [shape: f32[16,256], index: 0, kind: input, shape index: {}]
  %s1 = inlined_call_operand.hbm [shape: f32[16,256], index: 1, kind: input, shape index: {}]
  %s2 = inlined_call_operand.hbm [shape: f32[16,128], index: 2, kind: input, shape index: {}]
  %s3 = inlined_call_operand.hbm [shape: f32[2,1,128], index: 3, kind: output, shape index: {}]
  %s4 = sld [smem:[#allocation0]]
  $region61: #{tpu_custom_call.1} parent=0
    _
  %s6 = ssub.s32 1, %s4
  %s7 = scalar_select 0, %s6, %s4
  $region1: #{tpu_custom_call.1} parent=0
    #allocation2 [shape = 'u8[8192]{0}', space=vmem, size = 0x2000, scoped, tag = 'input window, operand 0']
    #allocation3 [shape = 's32[2]{0}', space=sflag, size = 0x8, scoped, tag = 'scoped memory for tpu_custom_call.1']
    #allocation4 [shape = 's32[2]{0}', space=sflag, size = 0x8, scoped, tag = 'scoped memory for tpu_custom_call.1']
    #allocation5 [shape = 'u8[8192]{0}', space=vmem, size = 0x2000, scoped, tag = 'input window, operand 1']
    #allocation6 [shape = 's32[2]{0}', space=sflag, size = 0x8, scoped, tag = 'scoped memory for tpu_custom_call.1']
    #allocation7 [shape = 'u8[8192]{0}', space=vmem, size = 0x2000, scoped, tag = 'input window, operand 2']
    #allocation8 [shape = 'u8[1024]{0}', space=vmem, size = 0x400, scoped, tag = 'output window, operand 0']
    %8 = vsyncpa [#allocation3], 0
    %s9 = scalar_lea.sflag [#allocation3], 1
    %10 = vsyncpa %s9, 0
    %11 = vsyncpa [#allocation6], 0
    %s12 = scalar_lea.sflag [#allocation6], 1
    %13 = vsyncpa %s12, 0
    %14 = vsyncpa [#allocation4], 0
    %s15 = scalar_lea.sflag [#allocation4], 1
    %16 = vsyncpa %s15, 0
    loop: start=0, step=1, limit=4
    $region2: #{tpu_custom_call.1} parent=1 // loop_pre_header
      _
    $region3: #{tpu_custom_call.1} parent=1 // loop_header
      %s18 = sphi 0, %s22
      %p19 = scmp.ge.s32.totalorder %s18, 4
      %s25 = sphi 0, %s37
      %s26 = sphi 0, %s33
      %s27 = sphi 0, %s25
      %s28 = sphi 0, %s26
      %s29 = sphi 0, %s27
      %s30 = sphi 0, %s28
      %s42 = sphi 0, %s44
      %s45 = sphi 0, %s42
      %s46 = sphi 0, %s45
      %s62 = sphi 0, %s46
      %s70 = sphi 0, %s72
      %s73 = sphi 0, %s70
      %s74 = sphi 0, %s73
      %s90 = sphi 0, %s74
      %s98 = sphi 0, %s100
      %s101 = sphi 0, %s98
      %s102 = sphi 0, %s101
      %s118 = sphi 0, %s102
      %s124 = sphi 0, %s126
      %s127 = sphi 0, %s124
      %s128 = sphi 0, %s127
      %s144 = sphi 0, %s128
    $region4: #{tpu_custom_call.1} parent=1 // loop_header_branch
      %21 = sbr.rel (%p19) target = $region8
    $region5: #{tpu_custom_call.1} parent=1 // loop_body
      %s23 = ssub.s32 %s18, 1
      %s24 = ssub.s32 %s18, 2
      %s31 = sadd.s32 1, %s26
      %p32 = scmp.ge.s32.totalorder %s31, 1
      %s33 = scalar_select %p32, 0, %s31
      %s34 = sadd.s32 1, %s25
      %s35 = scalar_select %p32, %s34, %s25
      %p36 = scmp.ge.s32.totalorder %s35, 2
      %s37 = scalar_select %p36, 0, %s35
      %s38 = sadd.s32 %s25, %s26
      %s39 = sadd.s32 %s37, %s33
      %s40 = ssub.s32 %s38, %s39
      %p41 = scmp.eq.s32.totalorder %s40, 0
      %s43 = sadd.s32 %s42, 1
      %s44 = scalar_select %p41, %s42, %s43
      %p47 = pneg %p41
      %p48 = scmp.eq.s32.totalorder %s18, 1
      %p49 = por %p47, %p48
      %p50 = scmp.ne.s32.totalorder %s42, %s45
      %p51 = scmp.eq.s32.totalorder %s18, 0
      %p52 = por %p50, %p51
      %p53 = scmp.ne.s32.totalorder %s42, %s45
      %p54 = scmp.eq.s32.totalorder %s23, 1
      %p55 = por %p53, %p54
      %p56 = scmp.ne.s32.totalorder %s45, %s46
      %p57 = scmp.eq.s32.totalorder %s23, 0
      %p58 = por %p56, %p57
      %p59 = scmp.ne.s32.totalorder %s45, %s46
      %p60 = scmp.eq.s32.totalorder %s24, 1
      %p61 = por %p59, %p60
      %p63 = scmp.ne.s32.totalorder %s46, %s62
      %p64 = scmp.eq.s32.totalorder %s24, 0
      %p65 = por %p63, %p64
      %s66 = sadd.s32 %s25, %s26
      %s67 = sadd.s32 %s37, %s33
      %s68 = ssub.s32 %s66, %s67
      %p69 = scmp.eq.s32.totalorder %s68, 0
      %s71 = sadd.s32 %s70, 1
      %s72 = scalar_select %p69, %s70, %s71
      %p75 = pneg %p69
      %p76 = scmp.eq.s32.totalorder %s18, 1
      %p77 = por %p75, %p76
      %p78 = scmp.ne.s32.totalorder %s70, %s73
      %p79 = scmp.eq.s32.totalorder %s18, 0
      %p80 = por %p78, %p79
      %p81 = scmp.ne.s32.totalorder %s70, %s73
      %p82 = scmp.eq.s32.totalorder %s23, 1
      %p83 = por %p81, %p82
      %p84 = scmp.ne.s32.totalorder %s73, %s74
      %p85 = scmp.eq.s32.totalorder %s23, 0
      %p86 = por %p84, %p85
      %p87 = scmp.ne.s32.totalorder %s73, %s74
      %p88 = scmp.eq.s32.totalorder %s24, 1
      %p89 = por %p87, %p88
      %p91 = scmp.ne.s32.totalorder %s74, %s90
      %p92 = scmp.eq.s32.totalorder %s24, 0
      %p93 = por %p91, %p92
      %s94 = sadd.s32 %s25, %s26
      %s95 = sadd.s32 %s37, %s33
      %s96 = ssub.s32 %s94, %s95
      %p97 = scmp.eq.s32.totalorder %s96, 0
      %s99 = sadd.s32 %s98, 1
      %s100 = scalar_select %p97, %s98, %s99
      %p103 = pneg %p97
      %p104 = scmp.eq.s32.totalorder %s18, 1
      %p105 = por %p103, %p104
      %p106 = scmp.ne.s32.totalorder %s98, %s101
      %p107 = scmp.eq.s32.totalorder %s18, 0
      %p108 = por %p106, %p107
      %p109 = scmp.ne.s32.totalorder %s98, %s101
      %p110 = scmp.eq.s32.totalorder %s23, 1
      %p111 = por %p109, %p110
      %p112 = scmp.ne.s32.totalorder %s101, %s102
      %p113 = scmp.eq.s32.totalorder %s23, 0
      %p114 = por %p112, %p113
      %p115 = scmp.ne.s32.totalorder %s101, %s102
      %p116 = scmp.eq.s32.totalorder %s24, 1
      %p117 = por %p115, %p116
      %p119 = scmp.ne.s32.totalorder %s102, %s118
      %p120 = scmp.eq.s32.totalorder %s24, 0
      %p121 = por %p119, %p120
      %s122 = ssub.s32 %s25, %s37
      %p123 = scmp.eq.s32.totalorder %s122, 0
      %s125 = sadd.s32 %s124, 1
      %s126 = scalar_select %p123, %s124, %s125
      %p129 = pneg %p123
      %p130 = scmp.eq.s32.totalorder %s18, 1
      %p131 = por %p129, %p130
      %p132 = scmp.ne.s32.totalorder %s124, %s127
      %p133 = scmp.eq.s32.totalorder %s18, 0
      %p134 = por %p132, %p133
      %p135 = scmp.ne.s32.totalorder %s124, %s127
      %p136 = scmp.eq.s32.totalorder %s23, 1
      %p137 = por %p135, %p136
      %p138 = scmp.ne.s32.totalorder %s127, %s128
      %p139 = scmp.eq.s32.totalorder %s23, 0
      %p140 = por %p138, %p139
      %p141 = scmp.ne.s32.totalorder %s127, %s128
      %p142 = scmp.eq.s32.totalorder %s24, 1
      %p143 = por %p141, %p142
      %p145 = scmp.ne.s32.totalorder %s128, %s144
      %p146 = scmp.eq.s32.totalorder %s24, 0
      %p147 = por %p145, %p146
      %p148 = scmp.le.s32.totalorder 1, %s18
      %p149 = scmp.lt.s32.totalorder %s18, 3
      %p150 = pnand %p148, %p149
      %p151 = pneg %p150
      // Predicated region
      $region9: #{tpu_custom_call.1} parent=5 // pred_check
        _
      $region10: #{tpu_custom_call.1} parent=5 // pred_check_branch
        %153 = sbr.rel (%p150) target = $region12
      $region11: #{tpu_custom_call.1} parent=5 // pred_region
        %s154 = ssub.s32 %s18, 1
      $region12: #{tpu_custom_call.1} parent=5 // pred_fallthru
        _
      %p155 = scmp.lt.s32.totalorder %s18, 2
      // Predicated region
      $region13: #{tpu_custom_call.1} parent=5 // pred_check
        %p156 = pneg %p155
      $region14: #{tpu_custom_call.1} parent=5 // pred_check_branch
        %158 = sbr.rel (%p156) target = $region16
      $region15: #{tpu_custom_call.1} parent=5 // pred_region
        // Predicated region
        $region17: #{tpu_custom_call.1} parent=15 // pred_check
          %p159 = pneg %p52
        $region18: #{tpu_custom_call.1} parent=15 // pred_check_branch
          %161 = sbr.rel (%p159) target = $region20
        $region19: #{tpu_custom_call.1} parent=15 // pred_region
          %s162 = sand.u32 %s42, 1
          %s163 = scalar_lea.sflag [#allocation3], %s162
          %s164 = sand.u32 %s42, 1
          %s165 = smul.addr %s164, 8
          %s166 = scalar_lea.vmem [#allocation2], %s165
          %s167 = sadd.s32 %s25, %s26
          %s169 = ssub.s32 128, 128
          %170 = vsyncadd %s163, %s169
          %s171 = smul.addr %s167, 2
          %s172 = smul.addr %s171, 128
          %s173 = scalar_lea.hbm %s0, %s172
          %s175 = sshll.u32 %s166, 4
          %s176 = int_to_ptr.vmem [resolvable:$true] %s175
          %178 = dma.hbm_to_vmem [thread:$0]  %s173, 128, %s176, %s163
        $region20: #{tpu_custom_call.1} parent=15 // pred_fallthru
          _
        // Predicated region
        $region21: #{tpu_custom_call.1} parent=15 // pred_check
          %p179 = pneg %p80
        $region22: #{tpu_custom_call.1} parent=15 // pred_check_branch
          %181 = sbr.rel (%p179) target = $region24
        $region23: #{tpu_custom_call.1} parent=15 // pred_region
          %s182 = sand.u32 %s18, 1
          %s183 = scalar_lea.sflag [#allocation6], %s182
          %s184 = sand.u32 %s70, 1
          %s185 = smul.addr %s184, 8
          %s186 = scalar_lea.vmem [#allocation5], %s185
          %s187 = sadd.s32 %s25, %s26
          %s189 = ssub.s32 128, 128
          %190 = vsyncadd %s183, %s189
          %s191 = smul.addr %s187, 2
          %s192 = sadd.s32 1, %s191
          %s193 = smul.addr %s192, 128
          %s194 = scalar_lea.hbm %s1, %s193
          %s196 = sshll.u32 %s186, 4
          %s197 = int_to_ptr.vmem [resolvable:$true] %s196
          %199 = dma.hbm_to_vmem [thread:$0]  %s194, 128, %s197, %s183
        $region24: #{tpu_custom_call.1} parent=15 // pred_fallthru
          _
        // Predicated region
        $region25: #{tpu_custom_call.1} parent=15 // pred_check
          %p200 = pneg %p108
        $region26: #{tpu_custom_call.1} parent=15 // pred_check_branch
          %202 = sbr.rel (%p200) target = $region28
        $region27: #{tpu_custom_call.1} parent=15 // pred_region
          %s203 = sand.u32 %s18, 1
          %s204 = scalar_lea.sflag [#allocation6], %s203
          %s205 = sand.u32 %s98, 1
          %s206 = smul.addr %s205, 8
          %s207 = scalar_lea.vmem [#allocation7], %s206
          %s208 = sadd.s32 %s25, %s26
          %s210 = ssub.s32 128, 128
          %211 = vsyncadd %s204, %s210
          %s212 = smul.addr %s208, 128
          %s213 = scalar_lea.hbm %s2, %s212
          %s215 = sshll.u32 %s207, 4
          %s216 = int_to_ptr.vmem [resolvable:$true] %s215
          %218 = dma.hbm_to_vmem [thread:$0]  %s213, 128, %s216, %s204
        $region28: #{tpu_custom_call.1} parent=15 // pred_fallthru
          _
      $region16: #{tpu_custom_call.1} parent=5 // pred_fallthru
        _
      %p219 = scmp.le.s32.totalorder 1, %s18
      %p220 = scmp.lt.s32.totalorder %s18, 3
      %p221 = pnand %p219, %p220
      %p222 = pneg %p221
      // Predicated region
      $region29: #{tpu_custom_call.1} parent=5 // pred_check
        _
      $region30: #{tpu_custom_call.1} parent=5 // pred_check_branch
        %224 = sbr.rel (%p221) target = $region32
      $region31: #{tpu_custom_call.1} parent=5 // pred_region
        %s225 = ssub.s32 %s18, 1
        %s226 = sand.u32 %s45, 1
        %s227 = scalar_lea.sflag [#allocation3], %s226
        %s228 = sand.u32 %s45, 1
        %s229 = smul.addr %s228, 8
        %s230 = scalar_lea.vmem [#allocation2], %s229
        // Predicated region
        $region33: #{tpu_custom_call.1} parent=31 // pred_check
          %p231 = pneg %p58
        $region34: #{tpu_custom_call.1} parent=31 // pred_check_branch
          %233 = sbr.rel (%p231) target = $region36
        $region35: #{tpu_custom_call.1} parent=31 // pred_region
          %234 = dma.done %s227, 128
        $region36: #{tpu_custom_call.1} parent=31 // pred_fallthru
          _
        %s235 = sand.u32 %s23, 1
        %s236 = scalar_lea.sflag [#allocation6], %s235
        %s237 = sand.u32 %s73, 1
        %s238 = smul.addr %s237, 8
        %s239 = scalar_lea.vmem [#allocation5], %s238
        // Predicated region
        $region37: #{tpu_custom_call.1} parent=31 // pred_check
          %p240 = pneg %p86
        $region38: #{tpu_custom_call.1} parent=31 // pred_check_branch
          %242 = sbr.rel (%p240) target = $region40
        $region39: #{tpu_custom_call.1} parent=31 // pred_region
          %243 = dma.done %s236, 128
        $region40: #{tpu_custom_call.1} parent=31 // pred_fallthru
          _
        %s244 = sand.u32 %s23, 1
        %s245 = scalar_lea.sflag [#allocation6], %s244
        %s246 = sand.u32 %s101, 1
        %s247 = smul.addr %s246, 8
        %s248 = scalar_lea.vmem [#allocation7], %s247
        // Predicated region
        $region41: #{tpu_custom_call.1} parent=31 // pred_check
          %p249 = pneg %p114
        $region42: #{tpu_custom_call.1} parent=31 // pred_check_branch
          %251 = sbr.rel (%p249) target = $region44
        $region43: #{tpu_custom_call.1} parent=31 // pred_region
          %252 = dma.done %s245, 128
        $region44: #{tpu_custom_call.1} parent=31 // pred_fallthru
          _
        %s253 = sand.u32 %s45, 1
        %s254 = scalar_lea.sflag [#allocation3], %s253
        %s255 = sand.u32 %s45, 1
        %s256 = smul.addr %s255, 8
        %s257 = scalar_lea.vmem [#allocation2], %s256
        %p258 = pneg %p58
        %p259 = pneg %p55
        %s260 = sand.u32 %s23, 1
        %s261 = scalar_lea.sflag [#allocation6], %s260
        %s262 = sand.u32 %s73, 1
        %s263 = smul.addr %s262, 8
        %s264 = scalar_lea.vmem [#allocation5], %s263
        %p265 = pneg %p86
        %p266 = pneg %p83
        %s267 = sand.u32 %s23, 1
        %s268 = scalar_lea.sflag [#allocation6], %s267
        %s269 = sand.u32 %s101, 1
        %s270 = smul.addr %s269, 8
        %s271 = scalar_lea.vmem [#allocation7], %s270
        %p272 = pneg %p114
        %p273 = pneg %p111
        %p274 = pneg %p140
        %p275 = pneg %p137
        %s276 = sand.u32 %s127, 1
        %s277 = scalar_lea.sflag [#allocation4], %s276
        %s278 = sand.u32 %s127, 1
        %s279 = scalar_lea.vmem [#allocation8], %s278
        %s280 = sadd.s32 %s27, %s28
        %s281 = sadd.s32 %s27, %s28
        %s282 = sadd.s32 %s27, %s28
        %p283 = scmp.eq.s32.totalorder %s28, 0
        // Predicated region
        $region45: #{tpu_custom_call.1} parent=31 // pred_check
          %p284 = pneg %p283
        $region46: #{tpu_custom_call.1} parent=31 // pred_check_branch
          %286 = sbr.rel (%p284) target = $region48
        $region47: #{tpu_custom_call.1} parent=31 // pred_region
          %287 = vst [vmem:[%s279] sm:$0x1] 0.0
        $region48: #{tpu_custom_call.1} parent=31 // pred_fallthru
          _
        %v288 = vld [vmem:[%s230] sm:$0xff]
        %v289 = vld [vmem:[%s239] sm:$0xff]
        %v290 = vmax.f32 %v289, 1e-06
        %v291 = vld [vmem:[%s248] sm:$0xff]
        %v292 = vmul.f32 %v290, %v290
        %v293 = vsub.f32 %v291, %v288
        %v294 = vlog2.pop %v292
        %v295 = vmul.f32 %v294, 0.6931472
        %v296 = vmul.f32 %v293, %v293
        %v297 = vrcp.pop %v292
        %v298 = vmul.f32 %v296, %v297
        %v299 = vadd.f32 %v295, %v298
        %v300 = vld [vmem:[%s279] sm:$0x1]
        %v301 = vrot.slane %v299, 4
        %v302 = vadd.f32 %v299, %v301
        %v303 = vrot.slane %v302, 2
        %v304 = vadd.f32 %v302, %v303
        %v305 = vrot.slane %v304, 1
        %v306 = vadd.f32 %v304, %v305
        %v307 = vadd.f32 %v300, %v306
        %308 = vst [vmem:[%s279] sm:$0x1] %v307
        %s309 = sand.u32 %s127, 1
        %s310 = scalar_lea.sflag [#allocation4], %s309
        %s311 = sand.u32 %s127, 1
        %s312 = scalar_lea.vmem [#allocation8], %s311
        // Predicated region
        $region49: #{tpu_custom_call.1} parent=31 // pred_check
          %p313 = pneg %p137
        $region50: #{tpu_custom_call.1} parent=31 // pred_check_branch
          %315 = sbr.rel (%p313) target = $region52
        $region51: #{tpu_custom_call.1} parent=31 // pred_region
          %s317 = ssub.s32 16, 16
          %318 = vsyncadd %s310, %s317
          %s319 = smul.addr %s27, 16
          %s320 = scalar_lea.hbm %s3, %s319
          %s322 = sshll.u32 %s312, 4
          %s323 = int_to_ptr.vmem [resolvable:$true] %s322
          %325 = dma.vmem_to_hbm [thread:$0]  %s323, 16, %s320, %s310
        $region52: #{tpu_custom_call.1} parent=31 // pred_fallthru
          _
      $region32: #{tpu_custom_call.1} parent=5 // pred_fallthru
        _
      %p326 = scmp.le.s32.totalorder 2, %s18
      // Predicated region
      $region53: #{tpu_custom_call.1} parent=5 // pred_check
        %p327 = pneg %p326
      $region54: #{tpu_custom_call.1} parent=5 // pred_check_branch
        %329 = sbr.rel (%p327) target = $region56
      $region55: #{tpu_custom_call.1} parent=5 // pred_region
        %s330 = ssub.s32 %s18, 2
        // Predicated region
        $region57: #{tpu_custom_call.1} parent=55 // pred_check
          %p331 = pneg %p143
        $region58: #{tpu_custom_call.1} parent=55 // pred_check_branch
          %333 = sbr.rel (%p331) target = $region60
        $region59: #{tpu_custom_call.1} parent=55 // pred_region
          %s334 = sand.u32 %s128, 1
          %s335 = scalar_lea.sflag [#allocation4], %s334
          %s336 = sand.u32 %s128, 1
          %s337 = scalar_lea.vmem [#allocation8], %s336
          %338 = dma.done %s335, 16
        $region60: #{tpu_custom_call.1} parent=55 // pred_fallthru
          _
      $region56: #{tpu_custom_call.1} parent=5 // pred_fallthru
        _
    $region6: #{tpu_custom_call.1} parent=1 // loop_footer
      %s22 = sadd.s32 1, %s18
    $region7: #{tpu_custom_call.1} parent=1 // loop_footer_branch
      %17 = sbr.rel target = $region3
    $region8: #{tpu_custom_call.1} parent=1 // loop_exit
      _
    %339 = vsyncpa [#allocation3], 1
    %s340 = scalar_lea.sflag [#allocation3], 1
    %341 = vsyncpa %s340, 1
    %342 = vsyncpa [#allocation6], 1
    %s343 = scalar_lea.sflag [#allocation6], 1
    %344 = vsyncpa %s343, 1
    %345 = vsyncpa [#allocation4], 1
    %s346 = scalar_lea.sflag [#allocation4], 1
    %347 = vsyncpa %s346, 1

</llo_original>
